<compile_context>
chip_gen: v7x
topology: tpu7x:2x2x1
jax: 0.10.0
libtpu: 0.0.40
codegen_flags: <defaults>
</compile_context>

<pallas_src>
import functools
import math

import jax
import jax.numpy as jnp
from jax import lax
from jax.experimental import pallas as pl
from jax.experimental.pallas import tpu as pltpu

NEG_INF = -1e10                      # matches the PyTorch module's -INF fill
VMEM_LIMIT = 48 * 1024 * 1024        # v7x-safe; raise to ~64 MiB on v5e/v6e


def _fit_tile(dim, target, align):
    """Largest t <= target with t % align == 0 and dim % t == 0; else the full dim."""
    if dim <= target:
        return dim
    t = (target // align) * align
    while t >= align:
        if dim % t == 0:
            return t
        t -= align
    return dim


# --------------------------------------------------------------------------
# Kernel 1: fused Q/K/V projection, head-major bf16 outputs
#   x: (B, N, D_in) bf16
#   wq/wk: (D_in, H*d_k) bf16   wv: (D_in, H*d_v) bf16   biases f32
#   outputs: Q,K: (B, H, N, d_k) bf16   V: (B, H, N, d_v) bf16
# --------------------------------------------------------------------------
def qkv_proj_kernel(x_ref, wq_ref, wk_ref, wv_ref, bq_ref, bk_ref, bv_ref,
                    q_ref, k_ref, v_ref, acc_q, acc_k, acc_v,
                    *, n_heads, d_k, d_v):
    kk = pl.program_id(2)

    @pl.when(kk == 0)
    def _init():
        acc_q[...] = jnp.zeros_like(acc_q)
        acc_k[...] = jnp.zeros_like(acc_k)
        acc_v[...] = jnp.zeros_like(acc_v)

    xb = x_ref[0]                                         # (ts, tk) bf16
    acc_q[...] += jnp.dot(xb, wq_ref[...], preferred_element_type=jnp.float32)
    acc_k[...] += jnp.dot(xb, wk_ref[...], preferred_element_type=jnp.float32)
    acc_v[...] += jnp.dot(xb, wv_ref[...], preferred_element_type=jnp.float32)

    @pl.when(kk == pl.num_programs(2) - 1)
    def _fin():
        qf = acc_q[...] + bq_ref[...]                     # (ts, H*d_k) f32
        kf = acc_k[...] + bk_ref[...]
        vf = acc_v[...] + bv_ref[...]
        for h in range(n_heads):                          # static unroll, head-major stores
            q_ref[0, h] = qf[:, h * d_k:(h + 1) * d_k].astype(q_ref.dtype)
            k_ref[0, h] = kf[:, h * d_k:(h + 1) * d_k].astype(k_ref.dtype)
            v_ref[0, h] = vf[:, h * d_v:(h + 1) * d_v].astype(v_ref.dtype)


def pallas_qkv_proj(x_bf16, wq, wk, wv, bq, bk, bv, *, n_heads, d_k, d_v,
                    ts=256, tk=512):
    B, N, D_in = x_bf16.shape
    Hdk, Hdv = n_heads * d_k, n_heads * d_v
    ts = _fit_tile(N, ts, 8)
    tk = _fit_tile(D_in, tk, 128)
    grid = (B, N // ts, D_in // tk)
    kern = functools.partial(qkv_proj_kernel, n_heads=n_heads, d_k=d_k, d_v=d_v)
    return pl.pallas_call(
        kern,
        out_shape=(
            jax.ShapeDtypeStruct((B, n_heads, N, d_k), jnp.bfloat16),
            jax.ShapeDtypeStruct((B, n_heads, N, d_k), jnp.bfloat16),
            jax.ShapeDtypeStruct((B, n_heads, N, d_v), jnp.bfloat16),
        ),
        grid=grid,
        in_specs=[
            pl.BlockSpec((1, ts, tk), lambda b, i, k: (b, i, k)),
            pl.BlockSpec((tk, Hdk), lambda b, i, k: (k, 0)),
            pl.BlockSpec((tk, Hdk), lambda b, i, k: (k, 0)),
            pl.BlockSpec((tk, Hdv), lambda b, i, k: (k, 0)),
            pl.BlockSpec((1, Hdk), lambda b, i, k: (0, 0)),
            pl.BlockSpec((1, Hdk), lambda b, i, k: (0, 0)),
            pl.BlockSpec((1, Hdv), lambda b, i, k: (0, 0)),
        ],
        out_specs=(
            pl.BlockSpec((1, n_heads, ts, d_k), lambda b, i, k: (b, 0, i, 0)),
            pl.BlockSpec((1, n_heads, ts, d_k), lambda b, i, k: (b, 0, i, 0)),
            pl.BlockSpec((1, n_heads, ts, d_v), lambda b, i, k: (b, 0, i, 0)),
        ),
        scratch_shapes=[
            pltpu.VMEM((ts, Hdk), jnp.float32),
            pltpu.VMEM((ts, Hdk), jnp.float32),
            pltpu.VMEM((ts, Hdv), jnp.float32),
        ],
        compiler_params=pltpu.CompilerParams(
            dimension_semantics=("parallel", "parallel", "arbitrary"),
            vmem_limit_bytes=VMEM_LIMIT,
        ),
    )(x_bf16, wq, wk, wv,
      bq.reshape(1, Hdk), bk.reshape(1, Hdk), bv.reshape(1, Hdv))


# --------------------------------------------------------------------------
# Kernel 2: flash-style attention, head-major layout, static per-head loop
#   q, k: (B, H, N, d_k) bf16   v: (B, H, N, d_v) bf16 (scale folded into q)
#   mask (optional): (B, H, N, N) int8
#   out: (B, H, N, d_v) bf16
# --------------------------------------------------------------------------
def _attn_step(q_ref, k_ref, v_ref, msk_ref, o_ref, m_sc, l_sc, acc_sc,
               *, n_heads):
    ki = pl.program_id(2)

    @pl.when(ki == 0)
    def _init():
        m_sc[...] = jnp.full_like(m_sc, -jnp.inf)
        l_sc[...] = jnp.zeros_like(l_sc)
        acc_sc[...] = jnp.zeros_like(acc_sc)

    for h in range(n_heads):             # static unroll; intermediates stay (tq, tkv)
        q_h = q_ref[0, h]                # (tq, d_k) bf16 (already scaled by 1/sqrt(d_k))
        k_h = k_ref[0, h]                # (tkv, d_k) bf16
        v_h = v_ref[0, h]                # (tkv, d_v) bf16
        # contract on d_k — no explicit k transpose.
        s = lax.dot_general(q_h, k_h, (((1,), (1,)), ((), ())),
                            preferred_element_type=jnp.float32)   # (tq, tkv) f32
        if msk_ref is not None:
            s = jnp.where(msk_ref[0, h] == 0, NEG_INF, s)

        m_prev = m_sc[h]                                    # (tq, 1)
        m_new = jnp.maximum(m_prev, jnp.max(s, axis=-1, keepdims=True))
        alpha = jnp.exp(m_prev - m_new)
        p = jnp.exp(s - m_new)                              # (tq, tkv) f32
        l_sc[h] = alpha * l_sc[h] + jnp.sum(p, axis=-1, keepdims=True)
        pv = jnp.dot(p.astype(v_h.dtype), v_h,
                     preferred_element_type=jnp.float32)    # (tq, d_v) f32
        acc_sc[h] = alpha * acc_sc[h] + pv
        m_sc[h] = m_new

    @pl.when(ki == pl.num_programs(2) - 1)
    def _fin():
        for h in range(n_heads):
            inv = pl.reciprocal(l_sc[h], approx=True)       # EUP slot
            o_ref[0, h] = (acc_sc[h] * inv).astype(o_ref.dtype)


def attn_kernel(q_ref, k_ref, v_ref, o_ref, m_sc, l_sc, acc_sc, *, n_heads):
    _attn_step(q_ref, k_ref, v_ref, None, o_ref, m_sc, l_sc, acc_sc,
               n_heads=n_heads)


def attn_kernel_masked(q_ref, k_ref, v_ref, msk_ref, o_ref, m_sc, l_sc, acc_sc,
                       *, n_heads):
    _attn_step(q_ref, k_ref, v_ref, msk_ref, o_ref, m_sc, l_sc, acc_sc,
               n_heads=n_heads)


def pallas_attention(q, k, v, mask_i8, *, tq=128, tkv=256):
    """q,k: (B,H,N,d_k)  v: (B,H,N,d_v) bf16, mask_i8: (B,H,N,N) int8 or None
       -> (B, H, N, d_v) bf16."""
    B, H, N, d_k = q.shape
    d_v = v.shape[-1]
    tq = _fit_tile(N, tq, 8)
    tkv = _fit_tile(N, tkv, 128)     # kv is the lane dim of scores: keep 128-aligned
    grid = (B, N // tq, N // tkv)

    in_specs = [
        pl.BlockSpec((1, H, tq, d_k), lambda b, qi, ki: (b, 0, qi, 0)),
        pl.BlockSpec((1, H, tkv, d_k), lambda b, qi, ki: (b, 0, ki, 0)),
        pl.BlockSpec((1, H, tkv, d_v), lambda b, qi, ki: (b, 0, ki, 0)),
    ]
    args = [q, k, v]
    if mask_i8 is not None:
        in_specs.append(
            pl.BlockSpec((1, H, tq, tkv), lambda b, qi, ki: (b, 0, qi, ki)))
        args.append(mask_i8)
        kern = functools.partial(attn_kernel_masked, n_heads=H)
    else:
        kern = functools.partial(attn_kernel, n_heads=H)

    return pl.pallas_call(
        kern,
        out_shape=jax.ShapeDtypeStruct((B, H, N, d_v), jnp.bfloat16),
        grid=grid,
        in_specs=in_specs,
        out_specs=pl.BlockSpec((1, H, tq, d_v), lambda b, qi, ki: (b, 0, qi, 0)),
        scratch_shapes=[
            pltpu.VMEM((H, tq, 1), jnp.float32),    # running max m
            pltpu.VMEM((H, tq, 1), jnp.float32),    # running denom l
            pltpu.VMEM((H, tq, d_v), jnp.float32),  # running numerator
        ],
        compiler_params=pltpu.CompilerParams(
            dimension_semantics=("parallel", "parallel", "arbitrary"),
            vmem_limit_bytes=VMEM_LIMIT,
        ),
    )(*args)


# --------------------------------------------------------------------------
# Kernel 3: output projection fused with the head merge (reduction over H)
#   attn: (B, H, N, d_v) bf16   w_o: (H, d_v, d_model) bf16   b_o: (d_model,) f32
#   out:  (B, N, d_model) f32        out[b,n,:] = sum_h attn[b,h,n,:] @ w_o[h]
# --------------------------------------------------------------------------
def out_proj_kernel(a_ref, w_ref, b_ref, o_ref, acc_ref):
    h = pl.program_id(3)

    @pl.when(h == 0)
    def _init():
        acc_ref[...] = jnp.zeros_like(acc_ref)

    acc_ref[...] += jnp.dot(a_ref[0, 0], w_ref[0],
                            preferred_element_type=jnp.float32)

    @pl.when(h == pl.num_programs(3) - 1)
    def _fin():
        o_ref[0] = (acc_ref[...] + b_ref[...]).astype(o_ref.dtype)


def pallas_out_proj(attn, w_o, b_o, *, d_model, tm=256, tn=256):
    B, H, N, d_v = attn.shape
    tm = _fit_tile(N, tm, 8)
    tn = _fit_tile(d_model, tn, 128)
    grid = (B, N // tm, d_model // tn, H)
    return pl.pallas_call(
        out_proj_kernel,
        out_shape=jax.ShapeDtypeStruct((B, N, d_model), jnp.float32),
        grid=grid,
        in_specs=[
            pl.BlockSpec((1, 1, tm, d_v), lambda b, i, j, h: (b, h, i, 0)),
            pl.BlockSpec((1, d_v, tn), lambda b, i, j, h: (h, 0, j)),
            pl.BlockSpec((1, tn), lambda b, i, j, h: (0, j)),
        ],
        out_specs=pl.BlockSpec((1, tm, tn), lambda b, i, j, h: (b, i, j)),
        scratch_shapes=[pltpu.VMEM((tm, tn), jnp.float32)],
        compiler_params=pltpu.CompilerParams(
            dimension_semantics=("parallel", "parallel", "parallel", "arbitrary"),
            vmem_limit_bytes=VMEM_LIMIT,
        ),
    )(attn, w_o, b_o.reshape(1, d_model))


# --------------------------------------------------------------------------
# Full MultiHeadAttention forward (JAX glue around the Pallas kernels)
# --------------------------------------------------------------------------
def init_params(key, d_model, n_heads, d_k=None, d_v=None):
    d_k = d_k or d_model // n_heads
    d_v = d_v or d_model // n_heads
    ks = jax.random.split(key, 8)

    def linear_init(kw, kb, out_f, in_f):
        # PyTorch nn.Linear init: U(-1/sqrt(in_f), 1/sqrt(in_f))
        bound = 1.0 / math.sqrt(float(in_f))
        w = jax.random.uniform(kw, (out_f, in_f), jnp.float32, -bound, bound)
        b = jax.random.uniform(kb, (out_f,), jnp.float32, -bound, bound)
        return w, b

    return {
        "W_q": linear_init(ks[0], ks[1], d_k * n_heads, d_model),
        "W_k": linear_init(ks[2], ks[3], d_k * n_heads, d_model),
        "W_v": linear_init(ks[4], ks[5], d_v * n_heads, d_model),
        "W_o": linear_init(ks[6], ks[7], d_model, d_v * n_heads),
        "d_k": d_k, "d_v": d_v, "n_heads": n_heads, "d_model": d_model,
    }


def multi_head_attention(params, X, mask=None):
    """X: (B, N, d_model) f32, mask: (B, H, N, N) or None -> (B, N, d_model) f32."""
    B, N, D = X.shape
    H, d_k, d_v = params["n_heads"], params["d_k"], params["d_v"]
    scale = 1.0 / math.sqrt(float(d_k))

    wq, bq = params["W_q"]    # PyTorch layout: (out_features, in_features)
    wk, bk = params["W_k"]
    wv, bv = params["W_v"]
    wo, bo = params["W_o"]

    # bf16 activations/weights for the MXU; f32 accumulation happens in-kernel.
    x_bf = X.astype(jnp.bfloat16)
    # Fold the 1/sqrt(d_k) softmax scale into the Q projection.
    wq_t = (wq.T * scale).astype(jnp.bfloat16)     # (D, H*d_k)
    bq_s = (bq * scale).astype(jnp.float32)
    wk_t = wk.T.astype(jnp.bfloat16)
    wv_t = wv.T.astype(jnp.bfloat16)

    Q, K, V = pallas_qkv_proj(x_bf, wq_t, wk_t, wv_t, bq_s, bk, bv,
                              n_heads=H, d_k=d_k, d_v=d_v)   # (B,H,N,d) bf16

    if mask is None:
        mask_i8 = None
    elif mask.dtype == jnp.int8:
        mask_i8 = mask
    elif mask.dtype == jnp.bool_:
        mask_i8 = mask.astype(jnp.int8)
    else:
        mask_i8 = (mask != 0).astype(jnp.int8)

    attn = pallas_attention(Q, K, V, mask_i8)                # (B, H, N, d_v) bf16

    wo_h = wo.T.reshape(H, d_v, D).astype(jnp.bfloat16)      # head-split W_o
    return pallas_out_proj(attn, wo_h, bo, d_model=D)        # (B, N, D) f32


# --------------------------------------------------------------------------
# Pure-JAX reference for a sanity check
# --------------------------------------------------------------------------
def reference_mha(params, X, mask=None):
    B, N, D = X.shape
    H, d_k, d_v = params["n_heads"], params["d_k"], params["d_v"]
    wq, bq = params["W_q"]
    wk, bk = params["W_k"]
    wv, bv = params["W_v"]
    wo, bo = params["W_o"]
    Q = (X @ wq.T + bq).reshape(B, N, H, d_k).transpose(0, 2, 1, 3)
    K = (X @ wk.T + bk).reshape(B, N, H, d_k).transpose(0, 2, 1, 3)
    V = (X @ wv.T + bv).reshape(B, N, H, d_v).transpose(0, 2, 1, 3)
    scale = 1.0 / math.sqrt(float(d_k))
    s = jnp.einsum("bhnd,bhmd->bhnm", Q, K) * scale
    if mask is not None:
        s = jnp.where(mask == 0, NEG_INF, s)
    p = jax.nn.softmax(s, axis=-1)
    o = jnp.einsum("bhnm,bhmd->bhnd", p, V)
    o = o.transpose(0, 2, 1, 3).reshape(B, N, H * d_v)
    return o @ wo.T + bo


if __name__ == "__main__":
    B, N, d_model, n_heads = 2, 8, 32, 4
    key = jax.random.PRNGKey(0)
    k_param, k_x = jax.random.split(key)

    params = init_params(k_param, d_model, n_heads)
    X = jax.random.normal(k_x, (B, N, d_model), dtype=jnp.float32)

    # --- mask=None path ---
    out = jax.block_until_ready(multi_head_attention(params, X, mask=None))
    ref = reference_mha(params, X, mask=None)
    assert out.shape == (B, N, d_model)
    # bf16 MXU operands (f32 accumulation) -> slightly looser tolerance than pure f32.
    assert jnp.allclose(out, ref, atol=2e-2, rtol=2e-2), "mismatch (no mask)"

    # --- masked path (causal mask broadcast over heads) ---
    mask = jnp.broadcast_to(
        jnp.tril(jnp.ones((N, N), jnp.float32)), (B, n_heads, N, N)
    )
    out_m = jax.block_until_ready(multi_head_attention(params, X, mask=mask))
    ref_m = reference_mha(params, X, mask=mask)
    assert jnp.allclose(out_m, ref_m, atol=2e-2, rtol=2e-2), "mismatch (mask)"

    print("KERNEL_OK")
</pallas_src>

<mosaic_0001>
module attributes {stable_mosaic.version = 11 : i64} {
  func.func @qkv_proj_kernel(%arg0: i32, %arg1: i32, %arg2: i32, %arg3: memref<1x8x32xbf16, #tpu.memory_space<vmem>>, %arg4: memref<32x32xbf16, #tpu.memory_space<vmem>>, %arg5: memref<32x32xbf16, #tpu.memory_space<vmem>>, %arg6: memref<32x32xbf16, #tpu.memory_space<vmem>>, %arg7: memref<1x32xf32, #tpu.memory_space<vmem>>, %arg8: memref<1x32xf32, #tpu.memory_space<vmem>>, %arg9: memref<1x32xf32, #tpu.memory_space<vmem>>, %arg10: memref<1x4x8x8xbf16, #tpu.memory_space<vmem>>, %arg11: memref<1x4x8x8xbf16, #tpu.memory_space<vmem>>, %arg12: memref<1x4x8x8xbf16, #tpu.memory_space<vmem>>, %arg13: memref<8x32xf32, #tpu.memory_space<vmem>>, %arg14: memref<8x32xf32, #tpu.memory_space<vmem>>, %arg15: memref<8x32xf32, #tpu.memory_space<vmem>>) attributes {dimension_semantics = [#tpu.dimension_semantics<parallel>, #tpu.dimension_semantics<parallel>, #tpu.dimension_semantics<arbitrary>], iteration_bounds = array<i64: 2, 1, 1>, scalar_prefetch = 0 : i64, scratch_operands = 3 : i64, tpu.core_type = #tpu.core_type<tc>, window_params = [{transform_indices = @transform_0, window_bounds = array<i64: 1, 8, 32>}, {transform_indices = @transform_1, window_bounds = array<i64: 32, 32>}, {transform_indices = @transform_2, window_bounds = array<i64: 32, 32>}, {transform_indices = @transform_3, window_bounds = array<i64: 32, 32>}, {pipeline_mode = #tpu.pipeline_mode<synchronous>, transform_indices = @transform_4, window_bounds = array<i64: 1, 32>}, {pipeline_mode = #tpu.pipeline_mode<synchronous>, transform_indices = @transform_5, window_bounds = array<i64: 1, 32>}, {pipeline_mode = #tpu.pipeline_mode<synchronous>, transform_indices = @transform_6, window_bounds = array<i64: 1, 32>}, {transform_indices = @transform_7, window_bounds = array<i64: 1, 4, 8, 8>}, {transform_indices = @transform_8, window_bounds = array<i64: 1, 4, 8, 8>}, {transform_indices = @transform_9, window_bounds = array<i64: 1, 4, 8, 8>}]} {
    %c0_i32 = arith.constant 0 : i32
    %0 = arith.cmpi eq, %arg2, %c0_i32 : i32
    %1 = arith.extui %0 : i1 to i32
    %c0_i32_0 = arith.constant 0 : i32
    %2 = arith.cmpi ne, %1, %c0_i32_0 : i32
    scf.if %2 {
      %cst_25 = arith.constant 0.000000e+00 : f32
      %23 = vector.broadcast %cst_25 : f32 to vector<8x32xf32>
      %c0_26 = arith.constant 0 : index
      %c0_27 = arith.constant 0 : index
      %24 = vector.load %arg13[%c0_26, %c0_27] : memref<8x32xf32, #tpu.memory_space<vmem>>, vector<8x32xf32>
      tpu.vector_store %arg13[%c0_26, %c0_27], %23 {strides = array<i32>} : memref<8x32xf32, #tpu.memory_space<vmem>>, vector<8x32xf32>,
      %cst_28 = arith.constant 0.000000e+00 : f32
      %25 = vector.broadcast %cst_28 : f32 to vector<8x32xf32>
      %c0_29 = arith.constant 0 : index
      %c0_30 = arith.constant 0 : index
      %26 = vector.load %arg14[%c0_29, %c0_30] : memref<8x32xf32, #tpu.memory_space<vmem>>, vector<8x32xf32>
      tpu.vector_store %arg14[%c0_29, %c0_30], %25 {strides = array<i32>} : memref<8x32xf32, #tpu.memory_space<vmem>>, vector<8x32xf32>,
      %cst_31 = arith.constant 0.000000e+00 : f32
      %27 = vector.broadcast %cst_31 : f32 to vector<8x32xf32>
      %c0_32 = arith.constant 0 : index
      %c0_33 = arith.constant 0 : index
      %28 = vector.load %arg15[%c0_32, %c0_33] : memref<8x32xf32, #tpu.memory_space<vmem>>, vector<8x32xf32>
      tpu.vector_store %arg15[%c0_32, %c0_33], %27 {strides = array<i32>} : memref<8x32xf32, #tpu.memory_space<vmem>>, vector<8x32xf32>,
    } else {
    }
    %c0 = arith.constant 0 : index
    %c0_1 = arith.constant 0 : index
    %c0_2 = arith.constant 0 : index
    %3 = vector.load %arg3[%c0, %c0_1, %c0_2] : memref<1x8x32xbf16, #tpu.memory_space<vmem>>, vector<1x8x32xbf16>
    %4 = vector.shape_cast %3 : vector<1x8x32xbf16> to vector<8x32xbf16>
    %c0_3 = arith.constant 0 : index
    %c0_4 = arith.constant 0 : index
    %5 = vector.load %arg13[%c0_3, %c0_4] : memref<8x32xf32, #tpu.memory_space<vmem>>, vector<8x32xf32>
    %c0_5 = arith.constant 0 : index
    %c0_6 = arith.constant 0 : index
    %6 = vector.load %arg4[%c0_5, %c0_6] : memref<32x32xbf16, #tpu.memory_space<vmem>>, vector<32x32xbf16>
    %cst = arith.constant dense<0.000000e+00> : vector<8x32xf32>
    %7 = tpu.matmul %4, %6, %cst {dimension_numbers = #tpu.dot_dimension_numbers<[1], [0], [0], [1], [0, 0, 1, 1], [], []>} : vector<8x32xbf16>, vector<32x32xbf16>, vector<8x32xf32> -> vector<8x32xf32>
    %8 = arith.addf %5, %7 : vector<8x32xf32>
    %c0_7 = arith.constant 0 : index
    %c0_8 = arith.constant 0 : index
    %9 = vector.load %arg13[%c0_7, %c0_8] : memref<8x32xf32, #tpu.memory_space<vmem>>, vector<8x32xf32>
    tpu.vector_store %arg13[%c0_7, %c0_8], %8 {strides = array<i32>} : memref<8x32xf32, #tpu.memory_space<vmem>>, vector<8x32xf32>,
    %c0_9 = arith.constant 0 : index
    %c0_10 = arith.constant 0 : index
    %10 = vector.load %arg14[%c0_9, %c0_10] : memref<8x32xf32, #tpu.memory_space<vmem>>, vector<8x32xf32>
    %c0_11 = arith.constant 0 : index
    %c0_12 = arith.constant 0 : index
    %11 = vector.load %arg5[%c0_11, %c0_12] : memref<32x32xbf16, #tpu.memory_space<vmem>>, vector<32x32xbf16>
    %cst_13 = arith.constant dense<0.000000e+00> : vector<8x32xf32>
    %12 = tpu.matmul %4, %11, %cst_13 {dimension_numbers = #tpu.dot_dimension_numbers<[1], [0], [0], [1], [0, 0, 1, 1], [], []>} : vector<8x32xbf16>, vector<32x32xbf16>, vector<8x32xf32> -> vector<8x32xf32>
    %13 = arith.addf %10, %12 : vector<8x32xf32>
    %c0_14 = arith.constant 0 : index
    %c0_15 = arith.constant 0 : index
    %14 = vector.load %arg14[%c0_14, %c0_15] : memref<8x32xf32, #tpu.memory_space<vmem>>, vector<8x32xf32>
    tpu.vector_store %arg14[%c0_14, %c0_15], %13 {strides = array<i32>} : memref<8x32xf32, #tpu.memory_space<vmem>>, vector<8x32xf32>,
    %c0_16 = arith.constant 0 : index
    %c0_17 = arith.constant 0 : index
    %15 = vector.load %arg15[%c0_16, %c0_17] : memref<8x32xf32, #tpu.memory_space<vmem>>, vector<8x32xf32>
    %c0_18 = arith.constant 0 : index
    %c0_19 = arith.constant 0 : index
    %16 = vector.load %arg6[%c0_18, %c0_19] : memref<32x32xbf16, #tpu.memory_space<vmem>>, vector<32x32xbf16>
    %cst_20 = arith.constant dense<0.000000e+00> : vector<8x32xf32>
    %17 = tpu.matmul %4, %16, %cst_20 {dimension_numbers = #tpu.dot_dimension_numbers<[1], [0], [0], [1], [0, 0, 1, 1], [], []>} : vector<8x32xbf16>, vector<32x32xbf16>, vector<8x32xf32> -> vector<8x32xf32>
    %18 = arith.addf %15, %17 : vector<8x32xf32>
    %c0_21 = arith.constant 0 : index
    %c0_22 = arith.constant 0 : index
    %19 = vector.load %arg15[%c0_21, %c0_22] : memref<8x32xf32, #tpu.memory_space<vmem>>, vector<8x32xf32>
    tpu.vector_store %arg15[%c0_21, %c0_22], %18 {strides = array<i32>} : memref<8x32xf32, #tpu.memory_space<vmem>>, vector<8x32xf32>,
    %c0_i32_23 = arith.constant 0 : i32
    %20 = arith.cmpi eq, %arg2, %c0_i32_23 : i32
    %21 = arith.extui %20 : i1 to i32
    %c0_i32_24 = arith.constant 0 : i32
    %22 = arith.cmpi ne, %21, %c0_i32_24 : i32
    scf.if %22 {
      %c0_25 = arith.constant 0 : index
      %c0_26 = arith.constant 0 : index
      %23 = vector.load %arg13[%c0_25, %c0_26] : memref<8x32xf32, #tpu.memory_space<vmem>>, vector<8x32xf32>
      %c0_27 = arith.constant 0 : index
      %c0_28 = arith.constant 0 : index
      %24 = vector.load %arg7[%c0_27, %c0_28] : memref<1x32xf32, #tpu.memory_space<vmem>>, vector<1x32xf32>
      %25 = vector.broadcast %24 : vector<1x32xf32> to vector<8x32xf32>
      %26 = arith.addf %23, %25 : vector<8x32xf32>
      %c0_29 = arith.constant 0 : index
      %c0_30 = arith.constant 0 : index
      %27 = vector.load %arg14[%c0_29, %c0_30] : memref<8x32xf32, #tpu.memory_space<vmem>>, vector<8x32xf32>
      %c0_31 = arith.constant 0 : index
      %c0_32 = arith.constant 0 : index
      %28 = vector.load %arg8[%c0_31, %c0_32] : memref<1x32xf32, #tpu.memory_space<vmem>>, vector<1x32xf32>
      %29 = vector.broadcast %28 : vector<1x32xf32> to vector<8x32xf32>
      %30 = arith.addf %27, %29 : vector<8x32xf32>
      %c0_33 = arith.constant 0 : index
      %c0_34 = arith.constant 0 : index
      %31 = vector.load %arg15[%c0_33, %c0_34] : memref<8x32xf32, #tpu.memory_space<vmem>>, vector<8x32xf32>
      %c0_35 = arith.constant 0 : index
      %c0_36 = arith.constant 0 : index
      %32 = vector.load %arg9[%c0_35, %c0_36] : memref<1x32xf32, #tpu.memory_space<vmem>>, vector<1x32xf32>
      %33 = vector.broadcast %32 : vector<1x32xf32> to vector<8x32xf32>
      %34 = arith.addf %31, %33 : vector<8x32xf32>
      %35 = vector.extract_strided_slice %26 {offsets = [0, 0], sizes = [8, 8], strides = [1, 1]} : vector<8x32xf32> to vector<8x8xf32>
      %36 = arith.truncf %35 : vector<8x8xf32> to vector<8x8xbf16>
      %c0_37 = arith.constant 0 : index
      %c0_38 = arith.constant 0 : index
      %c0_39 = arith.constant 0 : index
      %c0_40 = arith.constant 0 : index
      %37 = vector.load %arg10[%c0_37, %c0_38, %c0_39, %c0_40] : memref<1x4x8x8xbf16, #tpu.memory_space<vmem>>, vector<1x1x8x8xbf16>
      %38 = vector.shape_cast %37 : vector<1x1x8x8xbf16> to vector<8x8xbf16>
      %39 = vector.shape_cast %36 : vector<8x8xbf16> to vector<1x1x8x8xbf16>
      tpu.vector_store %arg10[%c0_37, %c0_38, %c0_39, %c0_40], %39 {strides = array<i32>} : memref<1x4x8x8xbf16, #tpu.memory_space<vmem>>, vector<1x1x8x8xbf16>,
      %40 = vector.extract_strided_slice %30 {offsets = [0, 0], sizes = [8, 8], strides = [1, 1]} : vector<8x32xf32> to vector<8x8xf32>
      %41 = arith.truncf %40 : vector<8x8xf32> to vector<8x8xbf16>
      %c0_41 = arith.constant 0 : index
      %c0_42 = arith.constant 0 : index
      %c0_43 = arith.constant 0 : index
      %c0_44 = arith.constant 0 : index
      %42 = vector.load %arg11[%c0_41, %c0_42, %c0_43, %c0_44] : memref<1x4x8x8xbf16, #tpu.memory_space<vmem>>, vector<1x1x8x8xbf16>
      %43 = vector.shape_cast %42 : vector<1x1x8x8xbf16> to vector<8x8xbf16>
      %44 = vector.shape_cast %41 : vector<8x8xbf16> to vector<1x1x8x8xbf16>
      tpu.vector_store %arg11[%c0_41, %c0_42, %c0_43, %c0_44], %44 {strides = array<i32>} : memref<1x4x8x8xbf16, #tpu.memory_space<vmem>>, vector<1x1x8x8xbf16>,
      %45 = vector.extract_strided_slice %34 {offsets = [0, 0], sizes = [8, 8], strides = [1, 1]} : vector<8x32xf32> to vector<8x8xf32>
      %46 = arith.truncf %45 : vector<8x8xf32> to vector<8x8xbf16>
      %c0_45 = arith.constant 0 : index
      %c0_46 = arith.constant 0 : index
      %c0_47 = arith.constant 0 : index
      %c0_48 = arith.constant 0 : index
      %47 = vector.load %arg12[%c0_45, %c0_46, %c0_47, %c0_48] : memref<1x4x8x8xbf16, #tpu.memory_space<vmem>>, vector<1x1x8x8xbf16>
      %48 = vector.shape_cast %47 : vector<1x1x8x8xbf16> to vector<8x8xbf16>
      %49 = vector.shape_cast %46 : vector<8x8xbf16> to vector<1x1x8x8xbf16>
      tpu.vector_store %arg12[%c0_45, %c0_46, %c0_47, %c0_48], %49 {strides = array<i32>} : memref<1x4x8x8xbf16, #tpu.memory_space<vmem>>, vector<1x1x8x8xbf16>,
      %50 = vector.extract_strided_slice %26 {offsets = [0, 8], sizes = [8, 8], strides = [1, 1]} : vector<8x32xf32> to vector<8x8xf32>
      %51 = arith.truncf %50 : vector<8x8xf32> to vector<8x8xbf16>
      %c0_49 = arith.constant 0 : index
      %c1 = arith.constant 1 : index
      %c0_50 = arith.constant 0 : index
      %c0_51 = arith.constant 0 : index
      %52 = vector.load %arg10[%c0_49, %c1, %c0_50, %c0_51] : memref<1x4x8x8xbf16, #tpu.memory_space<vmem>>, vector<1x1x8x8xbf16>
      %53 = vector.shape_cast %52 : vector<1x1x8x8xbf16> to vector<8x8xbf16>
      %54 = vector.shape_cast %51 : vector<8x8xbf16> to vector<1x1x8x8xbf16>
      tpu.vector_store %arg10[%c0_49, %c1, %c0_50, %c0_51], %54 {strides = array<i32>} : memref<1x4x8x8xbf16, #tpu.memory_space<vmem>>, vector<1x1x8x8xbf16>,
      %55 = vector.extract_strided_slice %30 {offsets = [0, 8], sizes = [8, 8], strides = [1, 1]} : vector<8x32xf32> to vector<8x8xf32>
      %56 = arith.truncf %55 : vector<8x8xf32> to vector<8x8xbf16>
      %c0_52 = arith.constant 0 : index
      %c1_53 = arith.constant 1 : index
      %c0_54 = arith.constant 0 : index
      %c0_55 = arith.constant 0 : index
      %57 = vector.load %arg11[%c0_52, %c1_53, %c0_54, %c0_55] : memref<1x4x8x8xbf16, #tpu.memory_space<vmem>>, vector<1x1x8x8xbf16>
      %58 = vector.shape_cast %57 : vector<1x1x8x8xbf16> to vector<8x8xbf16>
      %59 = vector.shape_cast %56 : vector<8x8xbf16> to vector<1x1x8x8xbf16>
      tpu.vector_store %arg11[%c0_52, %c1_53, %c0_54, %c0_55], %59 {strides = array<i32>} : memref<1x4x8x8xbf16, #tpu.memory_space<vmem>>, vector<1x1x8x8xbf16>,
      %60 = vector.extract_strided_slice %34 {offsets = [0, 8], sizes = [8, 8], strides = [1, 1]} : vector<8x32xf32> to vector<8x8xf32>
      %61 = arith.truncf %60 : vector<8x8xf32> to vector<8x8xbf16>
      %c0_56 = arith.constant 0 : index
      %c1_57 = arith.constant 1 : index
      %c0_58 = arith.constant 0 : index
      %c0_59 = arith.constant 0 : index
      %62 = vector.load %arg12[%c0_56, %c1_57, %c0_58, %c0_59] : memref<1x4x8x8xbf16, #tpu.memory_space<vmem>>, vector<1x1x8x8xbf16>
      %63 = vector.shape_cast %62 : vector<1x1x8x8xbf16> to vector<8x8xbf16>
      %64 = vector.shape_cast %61 : vector<8x8xbf16> to vector<1x1x8x8xbf16>
      tpu.vector_store %arg12[%c0_56, %c1_57, %c0_58, %c0_59], %64 {strides = array<i32>} : memref<1x4x8x8xbf16, #tpu.memory_space<vmem>>, vector<1x1x8x8xbf16>,
      %65 = vector.extract_strided_slice %26 {offsets = [0, 16], sizes = [8, 8], strides = [1, 1]} : vector<8x32xf32> to vector<8x8xf32>
      %66 = arith.truncf %65 : vector<8x8xf32> to vector<8x8xbf16>
      %c0_60 = arith.constant 0 : index
      %c2 = arith.constant 2 : index
      %c0_61 = arith.constant 0 : index
      %c0_62 = arith.constant 0 : index
      %67 = vector.load %arg10[%c0_60, %c2, %c0_61, %c0_62] : memref<1x4x8x8xbf16, #tpu.memory_space<vmem>>, vector<1x1x8x8xbf16>
      %68 = vector.shape_cast %67 : vector<1x1x8x8xbf16> to vector<8x8xbf16>
      %69 = vector.shape_cast %66 : vector<8x8xbf16> to vector<1x1x8x8xbf16>
      tpu.vector_store %arg10[%c0_60, %c2, %c0_61, %c0_62], %69 {strides = array<i32>} : memref<1x4x8x8xbf16, #tpu.memory_space<vmem>>, vector<1x1x8x8xbf16>,
      %70 = vector.extract_strided_slice %30 {offsets = [0, 16], sizes = [8, 8], strides = [1, 1]} : vector<8x32xf32> to vector<8x8xf32>
      %71 = arith.truncf %70 : vector<8x8xf32> to vector<8x8xbf16>
      %c0_63 = arith.constant 0 : index
      %c2_64 = arith.constant 2 : index
      %c0_65 = arith.constant 0 : index
      %c0_66 = arith.constant 0 : index
      %72 = vector.load %arg11[%c0_63, %c2_64, %c0_65, %c0_66] : memref<1x4x8x8xbf16, #tpu.memory_space<vmem>>, vector<1x1x8x8xbf16>
      %73 = vector.shape_cast %72 : vector<1x1x8x8xbf16> to vector<8x8xbf16>
      %74 = vector.shape_cast %71 : vector<8x8xbf16> to vector<1x1x8x8xbf16>
      tpu.vector_store %arg11[%c0_63, %c2_64, %c0_65, %c0_66], %74 {strides = array<i32>} : memref<1x4x8x8xbf16, #tpu.memory_space<vmem>>, vector<1x1x8x8xbf16>,
      %75 = vector.extract_strided_slice %34 {offsets = [0, 16], sizes = [8, 8], strides = [1, 1]} : vector<8x32xf32> to vector<8x8xf32>
      %76 = arith.truncf %75 : vector<8x8xf32> to vector<8x8xbf16>
      %c0_67 = arith.constant 0 : index
      %c2_68 = arith.constant 2 : index
      %c0_69 = arith.constant 0 : index
      %c0_70 = arith.constant 0 : index
      %77 = vector.load %arg12[%c0_67, %c2_68, %c0_69, %c0_70] : memref<1x4x8x8xbf16, #tpu.memory_space<vmem>>, vector<1x1x8x8xbf16>
      %78 = vector.shape_cast %77 : vector<1x1x8x8xbf16> to vector<8x8xbf16>
      %79 = vector.shape_cast %76 : vector<8x8xbf16> to vector<1x1x8x8xbf16>
      tpu.vector_store %arg12[%c0_67, %c2_68, %c0_69, %c0_70], %79 {strides = array<i32>} : memref<1x4x8x8xbf16, #tpu.memory_space<vmem>>, vector<1x1x8x8xbf16>,
      %80 = vector.extract_strided_slice %26 {offsets = [0, 24], sizes = [8, 8], strides = [1, 1]} : vector<8x32xf32> to vector<8x8xf32>
      %81 = arith.truncf %80 : vector<8x8xf32> to vector<8x8xbf16>
      %c0_71 = arith.constant 0 : index
      %c3 = arith.constant 3 : index
      %c0_72 = arith.constant 0 : index
      %c0_73 = arith.constant 0 : index
      %82 = vector.load %arg10[%c0_71, %c3, %c0_72, %c0_73] : memref<1x4x8x8xbf16, #tpu.memory_space<vmem>>, vector<1x1x8x8xbf16>
      %83 = vector.shape_cast %82 : vector<1x1x8x8xbf16> to vector<8x8xbf16>
      %84 = vector.shape_cast %81 : vector<8x8xbf16> to vector<1x1x8x8xbf16>
      tpu.vector_store %arg10[%c0_71, %c3, %c0_72, %c0_73], %84 {strides = array<i32>} : memref<1x4x8x8xbf16, #tpu.memory_space<vmem>>, vector<1x1x8x8xbf16>,
      %85 = vector.extract_strided_slice %30 {offsets = [0, 24], sizes = [8, 8], strides = [1, 1]} : vector<8x32xf32> to vector<8x8xf32>
      %86 = arith.truncf %85 : vector<8x8xf32> to vector<8x8xbf16>
      %c0_74 = arith.constant 0 : index
      %c3_75 = arith.constant 3 : index
      %c0_76 = arith.constant 0 : index
      %c0_77 = arith.constant 0 : index
      %87 = vector.load %arg11[%c0_74, %c3_75, %c0_76, %c0_77] : memref<1x4x8x8xbf16, #tpu.memory_space<vmem>>, vector<1x1x8x8xbf16>
      %88 = vector.shape_cast %87 : vector<1x1x8x8xbf16> to vector<8x8xbf16>
      %89 = vector.shape_cast %86 : vector<8x8xbf16> to vector<1x1x8x8xbf16>
      tpu.vector_store %arg11[%c0_74, %c3_75, %c0_76, %c0_77], %89 {strides = array<i32>} : memref<1x4x8x8xbf16, #tpu.memory_space<vmem>>, vector<1x1x8x8xbf16>,
      %90 = vector.extract_strided_slice %34 {offsets = [0, 24], sizes = [8, 8], strides = [1, 1]} : vector<8x32xf32> to vector<8x8xf32>
      %91 = arith.truncf %90 : vector<8x8xf32> to vector<8x8xbf16>
      %c0_78 = arith.constant 0 : index
      %c3_79 = arith.constant 3 : index
      %c0_80 = arith.constant 0 : index
      %c0_81 = arith.constant 0 : index
      %92 = vector.load %arg12[%c0_78, %c3_79, %c0_80, %c0_81] : memref<1x4x8x8xbf16, #tpu.memory_space<vmem>>, vector<1x1x8x8xbf16>
      %93 = vector.shape_cast %92 : vector<1x1x8x8xbf16> to vector<8x8xbf16>
      %94 = vector.shape_cast %91 : vector<8x8xbf16> to vector<1x1x8x8xbf16>
      tpu.vector_store %arg12[%c0_78, %c3_79, %c0_80, %c0_81], %94 {strides = array<i32>} : memref<1x4x8x8xbf16, #tpu.memory_space<vmem>>, vector<1x1x8x8xbf16>,
    } else {
    }
    return
  }
  func.func @transform_0(%arg0: i32, %arg1: i32, %arg2: i32) -> (i32, i32, i32) {
    %c0_i32 = arith.constant 0 : i32
    return %arg0, %arg1, %arg2 : i32, i32, i32
  }
  func.func @transform_1(%arg0: i32, %arg1: i32, %arg2: i32) -> (i32, i32) {
    %c0_i32 = arith.constant 0 : i32
    %c0_i32_0 = arith.constant 0 : i32
    return %arg2, %c0_i32 : i32, i32
  }
  func.func @transform_2(%arg0: i32, %arg1: i32, %arg2: i32) -> (i32, i32) {
    %c0_i32 = arith.constant 0 : i32
    %c0_i32_0 = arith.constant 0 : i32
    return %arg2, %c0_i32 : i32, i32
  }
  func.func @transform_3(%arg0: i32, %arg1: i32, %arg2: i32) -> (i32, i32) {
    %c0_i32 = arith.constant 0 : i32
    %c0_i32_0 = arith.constant 0 : i32
    return %arg2, %c0_i32 : i32, i32
  }
  func.func @transform_4(%arg0: i32, %arg1: i32, %arg2: i32) -> (i32, i32) {
    %c0_i32 = arith.constant 0 : i32
    %c0_i32_0 = arith.constant 0 : i32
    %c0_i32_1 = arith.constant 0 : i32
    return %c0_i32, %c0_i32_0 : i32, i32
  }
  func.func @transform_5(%arg0: i32, %arg1: i32, %arg2: i32) -> (i32, i32) {
    %c0_i32 = arith.constant 0 : i32
    %c0_i32_0 = arith.constant 0 : i32
    %c0_i32_1 = arith.constant 0 : i32
    return %c0_i32, %c0_i32_0 : i32, i32
  }
  func.func @transform_6(%arg0: i32, %arg1: i32, %arg2: i32) -> (i32, i32) {
    %c0_i32 = arith.constant 0 : i32
    %c0_i32_0 = arith.constant 0 : i32
    %c0_i32_1 = arith.constant 0 : i32
    return %c0_i32, %c0_i32_0 : i32, i32
  }
  func.func @transform_7(%arg0: i32, %arg1: i32, %arg2: i32) -> (i32, i32, i32, i32) {
    %c0_i32 = arith.constant 0 : i32
    %c0_i32_0 = arith.constant 0 : i32
    %c0_i32_1 = arith.constant 0 : i32
    return %arg0, %c0_i32, %arg1, %c0_i32_0 : i32, i32, i32, i32
  }
  func.func @transform_8(%arg0: i32, %arg1: i32, %arg2: i32) -> (i32, i32, i32, i32) {
    %c0_i32 = arith.constant 0 : i32
    %c0_i32_0 = arith.constant 0 : i32
    %c0_i32_1 = arith.constant 0 : i32
    return %arg0, %c0_i32, %arg1, %c0_i32_0 : i32, i32, i32, i32
  }
  func.func @transform_9(%arg0: i32, %arg1: i32, %arg2: i32) -> (i32, i32, i32, i32) {
    %c0_i32 = arith.constant 0 : i32
    %c0_i32_0 = arith.constant 0 : i32
    %c0_i32_1 = arith.constant 0 : i32
    return %arg0, %c0_i32, %arg1, %c0_i32_0 : i32, i32, i32, i32
  }
}

</mosaic_0001>

<llo_original>
// kernel: tpu_custom_call.1
$region0: #{tpu_custom_call.1}
  #allocation0 [shape = 'u32[]', space=smem, size = 0x4, offset = 0x4, fixed_abs, tag = 'smem constant byte address 0x4 - core index']
  #allocation1 [shape = 'u32[144,128]{1,0:T(1,128)}', space=vmem, size = 0x12000, scoped, tag = 'internal scratch']
  #allocation2 [shape = 'f32[8,32]{1,0:T(8,128)}', space=vmem, size = 0x1000, scoped, tag = 'scratch operand']
  #allocation3 [shape = 'f32[8,32]{1,0:T(8,128)}', space=vmem, size = 0x1000, scoped, tag = 'scratch operand']
  #allocation4 [shape = 'f32[8,32]{1,0:T(8,128)}', space=vmem, size = 0x1000, scoped, tag = 'scratch operand']
  %s0 = inlined_call_operand.hbm [shape: bf16[2,8,32], index: 0, kind: input, shape index: {}]
  %s1 = inlined_call_operand.hbm [shape: bf16[32,32], index: 1, kind: input, shape index: {}]
  %s2 = inlined_call_operand.hbm [shape: bf16[32,32], index: 2, kind: input, shape index: {}]
  %s3 = inlined_call_operand.hbm [shape: bf16[32,32], index: 3, kind: input, shape index: {}]
  %s4 = inlined_call_operand.vmem [shape: f32[1,32], index: 4, kind: input, shape index: {}]
  %s5 = inlined_call_operand.vmem [shape: f32[1,32], index: 5, kind: input, shape index: {}]
  %s6 = inlined_call_operand.vmem [shape: f32[1,32], index: 6, kind: input, shape index: {}]
  %s7 = inlined_call_operand.hbm [shape: bf16[2,4,8,8], index: 7, kind: output, shape index: {0}]
  %s8 = inlined_call_operand.hbm [shape: bf16[2,4,8,8], index: 8, kind: output, shape index: {1}]
  %s9 = inlined_call_operand.hbm [shape: bf16[2,4,8,8], index: 9, kind: output, shape index: {2}]
  %10 = xla_tuple %s7, %s8, %s9
  %s11 = sld [smem:[#allocation0]]
  $region101: #{tpu_custom_call.1} parent=0
    _
  %s13 = ssub.s32 1, %s11
  %s14 = scalar_select 0, %s13, %s11
  $region1: #{tpu_custom_call.1} parent=0
    #allocation5 [shape = 'u8[4096]{0}', space=vmem, size = 0x1000, scoped, tag = 'input window, operand 0']
    #allocation6 [shape = 's32[2]{0}', space=sflag, size = 0x8, scoped, tag = 'scoped memory for tpu_custom_call.1']
    #allocation7 [shape = 's32[2]{0}', space=sflag, size = 0x8, scoped, tag = 'scoped memory for tpu_custom_call.1']
    #allocation8 [shape = 'u8[8192]{0}', space=vmem, size = 0x2000, scoped, tag = 'input window, operand 1, single buffered']
    #allocation9 [shape = 's32[1]{0}', space=sflag, size = 0x4, scoped, tag = 'scoped memory for tpu_custom_call.1']
    #allocation10 [shape = 'u8[8192]{0}', space=vmem, size = 0x2000, scoped, tag = 'input window, operand 2, single buffered']
    #allocation11 [shape = 'u8[8192]{0}', space=vmem, size = 0x2000, scoped, tag = 'input window, operand 3, single buffered']
    #allocation12 [shape = 's32[1]{0}', space=sflag, size = 0x4, scoped, tag = 'scoped memory for tpu_custom_call.1']
    #allocation13 [shape = 'u8[16384]{0}', space=vmem, size = 0x4000, scoped, tag = 'output window, operand 0']
    #allocation14 [shape = 'u8[16384]{0}', space=vmem, size = 0x4000, scoped, tag = 'output window, operand 1']
    #allocation15 [shape = 's32[2]{0}', space=sflag, size = 0x8, scoped, tag = 'scoped memory for tpu_custom_call.1']
    #allocation16 [shape = 'u8[16384]{0}', space=vmem, size = 0x4000, scoped, tag = 'output window, operand 2']
    %15 = vsyncpa [#allocation6], 0
    %s16 = scalar_lea.sflag [#allocation6], 1
    %17 = vsyncpa %s16, 0
    %18 = vsyncpa [#allocation9], 0
    %19 = vsyncpa [#allocation12], 0
    %20 = vsyncpa [#allocation7], 0
    %s21 = scalar_lea.sflag [#allocation7], 1
    %22 = vsyncpa %s21, 0
    %23 = vsyncpa [#allocation15], 0
    %s24 = scalar_lea.sflag [#allocation15], 1
    %25 = vsyncpa %s24, 0
    loop: start=0, step=1, limit=4
    $region2: #{tpu_custom_call.1} parent=1 // loop_pre_header
      _
    $region3: #{tpu_custom_call.1} parent=1 // loop_header
      %s27 = sphi 0, %s31
      %p28 = scmp.ge.s32.totalorder %s27, 4
      %s34 = sphi 0, %s53
      %s35 = sphi 0, %s49
      %s36 = sphi 0, %s45
      %s37 = sphi 0, %s34
      %s38 = sphi 0, %s35
      %s39 = sphi 0, %s36
      %s40 = sphi 0, %s37
      %s41 = sphi 0, %s38
      %s42 = sphi 0, %s39
      %s60 = sphi 0, %s62
      %s63 = sphi 0, %s60
      %s64 = sphi 0, %s63
      %s80 = sphi 0, %s64
      %s86 = sphi 0, %s88
      %s89 = sphi 0, %s86
      %s90 = sphi 0, %s89
      %s106 = sphi 0, %s90
      %s112 = sphi 0, %s114
      %s115 = sphi 0, %s112
      %s116 = sphi 0, %s115
      %s132 = sphi 0, %s116
      %s138 = sphi 0, %s140
      %s141 = sphi 0, %s138
      %s142 = sphi 0, %s141
      %s158 = sphi 0, %s142
      %s162 = sphi 0, %s162
      %s164 = sphi 0, %s162
      %s165 = sphi 0, %s164
      %s179 = sphi 0, %s165
      %s183 = sphi 0, %s183
      %s185 = sphi 0, %s183
      %s186 = sphi 0, %s185
      %s200 = sphi 0, %s186
      %s204 = sphi 0, %s204
      %s206 = sphi 0, %s204
      %s207 = sphi 0, %s206
      %s221 = sphi 0, %s207
      %s229 = sphi 0, %s231
      %s232 = sphi 0, %s229
      %s233 = sphi 0, %s232
      %s249 = sphi 0, %s233
      %s257 = sphi 0, %s259
      %s260 = sphi 0, %s257
      %s261 = sphi 0, %s260
      %s277 = sphi 0, %s261
      %s285 = sphi 0, %s287
      %s288 = sphi 0, %s285
      %s289 = sphi 0, %s288
      %s305 = sphi 0, %s289
    $region4: #{tpu_custom_call.1} parent=1 // loop_header_branch
      %30 = sbr.rel (%p28) target = $region8
    $region5: #{tpu_custom_call.1} parent=1 // loop_body
      %s32 = ssub.s32 %s27, 1
      %s33 = ssub.s32 %s27, 2
      %s43 = sadd.s32 1, %s36
      %p44 = scmp.ge.s32.totalorder %s43, 1
      %s45 = scalar_select %p44, 0, %s43
      %s46 = sadd.s32 1, %s35
      %s47 = scalar_select %p44, %s46, %s35
      %p48 = scmp.ge.s32.totalorder %s47, 1
      %s49 = scalar_select %p48, 0, %s47
      %s50 = sadd.s32 1, %s34
      %s51 = scalar_select %p48, %s50, %s34
      %p52 = scmp.ge.s32.totalorder %s51, 2
      %s53 = scalar_select %p52, 0, %s51
      %s54 = ssub.s32 %s34, %s53
      %s55 = ssub.s32 %s35, %s49
      %s56 = sor.u32 %s54, %s55
      %s57 = ssub.s32 %s36, %s45
      %s58 = sor.u32 %s56, %s57
      %p59 = scmp.eq.s32.totalorder %s58, 0
      %s61 = sadd.s32 %s60, 1
      %s62 = scalar_select %p59, %s60, %s61
      %p65 = pneg %p59
      %p66 = scmp.eq.s32.totalorder %s27, 1
      %p67 = por %p65, %p66
      %p68 = scmp.ne.s32.totalorder %s60, %s63
      %p69 = scmp.eq.s32.totalorder %s27, 0
      %p70 = por %p68, %p69
      %p71 = scmp.ne.s32.totalorder %s60, %s63
      %p72 = scmp.eq.s32.totalorder %s32, 1
      %p73 = por %p71, %p72
      %p74 = scmp.ne.s32.totalorder %s63, %s64
      %p75 = scmp.eq.s32.totalorder %s32, 0
      %p76 = por %p74, %p75
      %p77 = scmp.ne.s32.totalorder %s63, %s64
      %p78 = scmp.eq.s32.totalorder %s33, 1
      %p79 = por %p77, %p78
      %p81 = scmp.ne.s32.totalorder %s64, %s80
      %p82 = scmp.eq.s32.totalorder %s33, 0
      %p83 = por %p81, %p82
      %s84 = ssub.s32 %s36, %s45
      %p85 = scmp.eq.s32.totalorder %s84, 0
      %s87 = sadd.s32 %s86, 1
      %s88 = scalar_select %p85, %s86, %s87
      %p91 = pneg %p85
      %p92 = scmp.eq.s32.totalorder %s27, 1
      %p93 = por %p91, %p92
      %p94 = scmp.ne.s32.totalorder %s86, %s89
      %p95 = scmp.eq.s32.totalorder %s27, 0
      %p96 = por %p94, %p95
      %p97 = scmp.ne.s32.totalorder %s86, %s89
      %p98 = scmp.eq.s32.totalorder %s32, 1
      %p99 = por %p97, %p98
      %p100 = scmp.ne.s32.totalorder %s89, %s90
      %p101 = scmp.eq.s32.totalorder %s32, 0
      %p102 = por %p100, %p101
      %p103 = scmp.ne.s32.totalorder %s89, %s90
      %p104 = scmp.eq.s32.totalorder %s33, 1
      %p105 = por %p103, %p104
      %p107 = scmp.ne.s32.totalorder %s90, %s106
      %p108 = scmp.eq.s32.totalorder %s33, 0
      %p109 = por %p107, %p108
      %s110 = ssub.s32 %s36, %s45
      %p111 = scmp.eq.s32.totalorder %s110, 0
      %s113 = sadd.s32 %s112, 1
      %s114 = scalar_select %p111, %s112, %s113
      %p117 = pneg %p111
      %p118 = scmp.eq.s32.totalorder %s27, 1
      %p119 = por %p117, %p118
      %p120 = scmp.ne.s32.totalorder %s112, %s115
      %p121 = scmp.eq.s32.totalorder %s27, 0
      %p122 = por %p120, %p121
      %p123 = scmp.ne.s32.totalorder %s112, %s115
      %p124 = scmp.eq.s32.totalorder %s32, 1
      %p125 = por %p123, %p124
      %p126 = scmp.ne.s32.totalorder %s115, %s116
      %p127 = scmp.eq.s32.totalorder %s32, 0
      %p128 = por %p126, %p127
      %p129 = scmp.ne.s32.totalorder %s115, %s116
      %p130 = scmp.eq.s32.totalorder %s33, 1
      %p131 = por %p129, %p130
      %p133 = scmp.ne.s32.totalorder %s116, %s132
      %p134 = scmp.eq.s32.totalorder %s33, 0
      %p135 = por %p133, %p134
      %s136 = ssub.s32 %s36, %s45
      %p137 = scmp.eq.s32.totalorder %s136, 0
      %s139 = sadd.s32 %s138, 1
      %s140 = scalar_select %p137, %s138, %s139
      %p143 = pneg %p137
      %p144 = scmp.eq.s32.totalorder %s27, 1
      %p145 = por %p143, %p144
      %p146 = scmp.ne.s32.totalorder %s138, %s141
      %p147 = scmp.eq.s32.totalorder %s27, 0
      %p148 = por %p146, %p147
      %p149 = scmp.ne.s32.totalorder %s138, %s141
      %p150 = scmp.eq.s32.totalorder %s32, 1
      %p151 = por %p149, %p150
      %p152 = scmp.ne.s32.totalorder %s141, %s142
      %p153 = scmp.eq.s32.totalorder %s32, 0
      %p154 = por %p152, %p153
      %p155 = scmp.ne.s32.totalorder %s141, %s142
      %p156 = scmp.eq.s32.totalorder %s33, 1
      %p157 = por %p155, %p156
      %p159 = scmp.ne.s32.totalorder %s142, %s158
      %p160 = scmp.eq.s32.totalorder %s33, 0
      %p161 = por %p159, %p160
      %s163 = sadd.s32 %s162, 1
      %p166 = scmp.eq.s32.totalorder %s27, 1
      %p167 = scmp.ne.s32.totalorder %s162, %s164
      %p168 = scmp.eq.s32.totalorder %s27, 0
      %p169 = por %p167, %p168
      %p170 = scmp.ne.s32.totalorder %s162, %s164
      %p171 = scmp.eq.s32.totalorder %s32, 1
      %p172 = por %p170, %p171
      %p173 = scmp.ne.s32.totalorder %s164, %s165
      %p174 = scmp.eq.s32.totalorder %s32, 0
      %p175 = por %p173, %p174
      %p176 = scmp.ne.s32.totalorder %s164, %s165
      %p177 = scmp.eq.s32.totalorder %s33, 1
      %p178 = por %p176, %p177
      %p180 = scmp.ne.s32.totalorder %s165, %s179
      %p181 = scmp.eq.s32.totalorder %s33, 0
      %p182 = por %p180, %p181
      %s184 = sadd.s32 %s183, 1
      %p187 = scmp.eq.s32.totalorder %s27, 1
      %p188 = scmp.ne.s32.totalorder %s183, %s185
      %p189 = scmp.eq.s32.totalorder %s27, 0
      %p190 = por %p188, %p189
      %p191 = scmp.ne.s32.totalorder %s183, %s185
      %p192 = scmp.eq.s32.totalorder %s32, 1
      %p193 = por %p191, %p192
      %p194 = scmp.ne.s32.totalorder %s185, %s186
      %p195 = scmp.eq.s32.totalorder %s32, 0
      %p196 = por %p194, %p195
      %p197 = scmp.ne.s32.totalorder %s185, %s186
      %p198 = scmp.eq.s32.totalorder %s33, 1
      %p199 = por %p197, %p198
      %p201 = scmp.ne.s32.totalorder %s186, %s200
      %p202 = scmp.eq.s32.totalorder %s33, 0
      %p203 = por %p201, %p202
      %s205 = sadd.s32 %s204, 1
      %p208 = scmp.eq.s32.totalorder %s27, 1
      %p209 = scmp.ne.s32.totalorder %s204, %s206
      %p210 = scmp.eq.s32.totalorder %s27, 0
      %p211 = por %p209, %p210
      %p212 = scmp.ne.s32.totalorder %s204, %s206
      %p213 = scmp.eq.s32.totalorder %s32, 1
      %p214 = por %p212, %p213
      %p215 = scmp.ne.s32.totalorder %s206, %s207
      %p216 = scmp.eq.s32.totalorder %s32, 0
      %p217 = por %p215, %p216
      %p218 = scmp.ne.s32.totalorder %s206, %s207
      %p219 = scmp.eq.s32.totalorder %s33, 1
      %p220 = por %p218, %p219
      %p222 = scmp.ne.s32.totalorder %s207, %s221
      %p223 = scmp.eq.s32.totalorder %s33, 0
      %p224 = por %p222, %p223
      %s225 = ssub.s32 %s34, %s53
      %s226 = ssub.s32 %s35, %s49
      %s227 = sor.u32 %s225, %s226
      %p228 = scmp.eq.s32.totalorder %s227, 0
      %s230 = sadd.s32 %s229, 1
      %s231 = scalar_select %p228, %s229, %s230
      %p234 = pneg %p228
      %p235 = scmp.eq.s32.totalorder %s27, 1
      %p236 = por %p234, %p235
      %p237 = scmp.ne.s32.totalorder %s229, %s232
      %p238 = scmp.eq.s32.totalorder %s27, 0
      %p239 = por %p237, %p238
      %p240 = scmp.ne.s32.totalorder %s229, %s232
      %p241 = scmp.eq.s32.totalorder %s32, 1
      %p242 = por %p240, %p241
      %p243 = scmp.ne.s32.totalorder %s232, %s233
      %p244 = scmp.eq.s32.totalorder %s32, 0
      %p245 = por %p243, %p244
      %p246 = scmp.ne.s32.totalorder %s232, %s233
      %p247 = scmp.eq.s32.totalorder %s33, 1
      %p248 = por %p246, %p247
      %p250 = scmp.ne.s32.totalorder %s233, %s249
      %p251 = scmp.eq.s32.totalorder %s33, 0
      %p252 = por %p250, %p251
      %s253 = ssub.s32 %s34, %s53
      %s254 = ssub.s32 %s35, %s49
      %s255 = sor.u32 %s253, %s254
      %p256 = scmp.eq.s32.totalorder %s255, 0
      %s258 = sadd.s32 %s257, 1
      %s259 = scalar_select %p256, %s257, %s258
      %p262 = pneg %p256
      %p263 = scmp.eq.s32.totalorder %s27, 1
      %p264 = por %p262, %p263
      %p265 = scmp.ne.s32.totalorder %s257, %s260
      %p266 = scmp.eq.s32.totalorder %s27, 0
      %p267 = por %p265, %p266
      %p268 = scmp.ne.s32.totalorder %s257, %s260
      %p269 = scmp.eq.s32.totalorder %s32, 1
      %p270 = por %p268, %p269
      %p271 = scmp.ne.s32.totalorder %s260, %s261
      %p272 = scmp.eq.s32.totalorder %s32, 0
      %p273 = por %p271, %p272
      %p274 = scmp.ne.s32.totalorder %s260, %s261
      %p275 = scmp.eq.s32.totalorder %s33, 1
      %p276 = por %p274, %p275
      %p278 = scmp.ne.s32.totalorder %s261, %s277
      %p279 = scmp.eq.s32.totalorder %s33, 0
      %p280 = por %p278, %p279
      %s281 = ssub.s32 %s34, %s53
      %s282 = ssub.s32 %s35, %s49
      %s283 = sor.u32 %s281, %s282
      %p284 = scmp.eq.s32.totalorder %s283, 0
      %s286 = sadd.s32 %s285, 1
      %s287 = scalar_select %p284, %s285, %s286
      %p290 = pneg %p284
      %p291 = scmp.eq.s32.totalorder %s27, 1
      %p292 = por %p290, %p291
      %p293 = scmp.ne.s32.totalorder %s285, %s288
      %p294 = scmp.eq.s32.totalorder %s27, 0
      %p295 = por %p293, %p294
      %p296 = scmp.ne.s32.totalorder %s285, %s288
      %p297 = scmp.eq.s32.totalorder %s32, 1
      %p298 = por %p296, %p297
      %p299 = scmp.ne.s32.totalorder %s288, %s289
      %p300 = scmp.eq.s32.totalorder %s32, 0
      %p301 = por %p299, %p300
      %p302 = scmp.ne.s32.totalorder %s288, %s289
      %p303 = scmp.eq.s32.totalorder %s33, 1
      %p304 = por %p302, %p303
      %p306 = scmp.ne.s32.totalorder %s289, %s305
      %p307 = scmp.eq.s32.totalorder %s33, 0
      %p308 = por %p306, %p307
      %p309 = scmp.le.s32.totalorder 1, %s27
      %p310 = scmp.lt.s32.totalorder %s27, 3
      %p311 = pnand %p309, %p310
      %p312 = pneg %p311
      // Predicated region
      $region9: #{tpu_custom_call.1} parent=5 // pred_check
        _
      $region10: #{tpu_custom_call.1} parent=5 // pred_check_branch
        %314 = sbr.rel (%p311) target = $region12
      $region11: #{tpu_custom_call.1} parent=5 // pred_region
        %s315 = ssub.s32 %s27, 1
        // Predicated region
        $region13: #{tpu_custom_call.1} parent=11 // pred_check
          %p316 = pneg %p102
        $region14: #{tpu_custom_call.1} parent=11 // pred_check_branch
          %318 = sbr.rel (%p316) target = $region16
        $region15: #{tpu_custom_call.1} parent=11 // pred_region
          %s319 = smul.u32 4, %s39
          %s321 = ssub.s32 256, 256
          %322 = vsyncadd [#allocation9], %s321
          %s323 = smul.addr %s319, 64
          %s324 = scalar_lea.hbm %s1, %s323
          %s325 = sshll.u32 [#allocation8], 4
          %s326 = int_to_ptr.vmem [resolvable:$true] %s325
          %331 = dma.hbm_to_vmem [thread:$0]  %s324, 256, %s326, [#allocation9], 64, 64, 4
        $region16: #{tpu_custom_call.1} parent=11 // pred_fallthru
          _
        // Predicated region
        $region17: #{tpu_custom_call.1} parent=11 // pred_check
          %p332 = pneg %p128
        $region18: #{tpu_custom_call.1} parent=11 // pred_check_branch
          %334 = sbr.rel (%p332) target = $region20
        $region19: #{tpu_custom_call.1} parent=11 // pred_region
          %s335 = smul.u32 4, %s39
          %s337 = ssub.s32 256, 256
          %338 = vsyncadd [#allocation9], %s337
          %s339 = smul.addr %s335, 64
          %s340 = scalar_lea.hbm %s2, %s339
          %s341 = sshll.u32 [#allocation10], 4
          %s342 = int_to_ptr.vmem [resolvable:$true] %s341
          %347 = dma.hbm_to_vmem [thread:$0]  %s340, 256, %s342, [#allocation9], 64, 64, 4
        $region20: #{tpu_custom_call.1} parent=11 // pred_fallthru
          _
        // Predicated region
        $region21: #{tpu_custom_call.1} parent=11 // pred_check
          %p348 = pneg %p154
        $region22: #{tpu_custom_call.1} parent=11 // pred_check_branch
          %350 = sbr.rel (%p348) target = $region24
        $region23: #{tpu_custom_call.1} parent=11 // pred_region
          %s351 = smul.u32 4, %s39
          %s353 = ssub.s32 256, 256
          %354 = vsyncadd [#allocation12], %s353
          %s355 = smul.addr %s351, 64
          %s356 = scalar_lea.hbm %s3, %s355
          %s357 = sshll.u32 [#allocation11], 4
          %s358 = int_to_ptr.vmem [resolvable:$true] %s357
          %363 = dma.hbm_to_vmem [thread:$0]  %s356, 256, %s358, [#allocation12], 64, 64, 4
        $region24: #{tpu_custom_call.1} parent=11 // pred_fallthru
          _
        // Predicated region
        $region25: #{tpu_custom_call.1} parent=11 // pred_check
          %p364 = pneg %p175
        $region26: #{tpu_custom_call.1} parent=11 // pred_check_branch
          %366 = sbr.rel (%p364) target = $region28
        $region27: #{tpu_custom_call.1} parent=11 // pred_region
          _
        $region28: #{tpu_custom_call.1} parent=11 // pred_fallthru
          _
        // Predicated region
        $region29: #{tpu_custom_call.1} parent=11 // pred_check
          %p367 = pneg %p196
        $region30: #{tpu_custom_call.1} parent=11 // pred_check_branch
          %369 = sbr.rel (%p367) target = $region32
        $region31: #{tpu_custom_call.1} parent=11 // pred_region
          _
        $region32: #{tpu_custom_call.1} parent=11 // pred_fallthru
          _
        // Predicated region
        $region33: #{tpu_custom_call.1} parent=11 // pred_check
          %p370 = pneg %p217
        $region34: #{tpu_custom_call.1} parent=11 // pred_check_branch
          %372 = sbr.rel (%p370) target = $region36
        $region35: #{tpu_custom_call.1} parent=11 // pred_region
          _
        $region36: #{tpu_custom_call.1} parent=11 // pred_fallthru
          _
      $region12: #{tpu_custom_call.1} parent=5 // pred_fallthru
        _
      %p373 = scmp.lt.s32.totalorder %s27, 2
      // Predicated region
      $region37: #{tpu_custom_call.1} parent=5 // pred_check
        %p374 = pneg %p373
      $region38: #{tpu_custom_call.1} parent=5 // pred_check_branch
        %376 = sbr.rel (%p374) target = $region40
      $region39: #{tpu_custom_call.1} parent=5 // pred_region
        // Predicated region
        $region41: #{tpu_custom_call.1} parent=39 // pred_check
          %p377 = pneg %p70
        $region42: #{tpu_custom_call.1} parent=39 // pred_check_branch
          %379 = sbr.rel (%p377) target = $region44
        $region43: #{tpu_custom_call.1} parent=39 // pred_region
          %s380 = sand.u32 %s60, 1
          %s381 = scalar_lea.sflag [#allocation6], %s380
          %s382 = sand.u32 %s60, 1
          %s383 = smul.addr %s382, 4
          %s384 = scalar_lea.vmem [#allocation5], %s383
          %s386 = ssub.s32 64, 64
          %387 = vsyncadd %s381, %s386
          %s388 = sadd.s32 %s36, %s35
          %s389 = sadd.s32 %s388, %s34
          %s390 = smul.addr %s389, 64
          %s391 = scalar_lea.hbm %s0, %s390
          %s393 = sshll.u32 %s384, 4
          %s394 = int_to_ptr.vmem [resolvable:$true] %s393
          %396 = dma.hbm_to_vmem [thread:$0]  %s391, 64, %s394, %s381
        $region44: #{tpu_custom_call.1} parent=39 // pred_fallthru
          _
      $region40: #{tpu_custom_call.1} parent=5 // pred_fallthru
        _
      %p397 = scmp.le.s32.totalorder 1, %s27
      %p398 = scmp.lt.s32.totalorder %s27, 3
      %p399 = pnand %p397, %p398
      %p400 = pneg %p399
      // Predicated region
      $region45: #{tpu_custom_call.1} parent=5 // pred_check
        _
      $region46: #{tpu_custom_call.1} parent=5 // pred_check_branch
        %402 = sbr.rel (%p399) target = $region48
      $region47: #{tpu_custom_call.1} parent=5 // pred_region
        %s403 = ssub.s32 %s27, 1
        %s404 = sand.u32 %s63, 1
        %s405 = scalar_lea.sflag [#allocation6], %s404
        %s406 = sand.u32 %s63, 1
        %s407 = smul.addr %s406, 4
        %s408 = scalar_lea.vmem [#allocation5], %s407
        // Predicated region
        $region49: #{tpu_custom_call.1} parent=47 // pred_check
          %p409 = pneg %p76
        $region50: #{tpu_custom_call.1} parent=47 // pred_check_branch
          %411 = sbr.rel (%p409) target = $region52
        $region51: #{tpu_custom_call.1} parent=47 // pred_region
          %412 = dma.done %s405, 64
        $region52: #{tpu_custom_call.1} parent=47 // pred_fallthru
          _
        // Predicated region
        $region53: #{tpu_custom_call.1} parent=47 // pred_check
          %p413 = pneg %p102
        $region54: #{tpu_custom_call.1} parent=47 // pred_check_branch
          %415 = sbr.rel (%p413) target = $region56
        $region55: #{tpu_custom_call.1} parent=47 // pred_region
          %416 = dma.done [#allocation9], 256
        $region56: #{tpu_custom_call.1} parent=47 // pred_fallthru
          _
        // Predicated region
        $region57: #{tpu_custom_call.1} parent=47 // pred_check
          %p417 = pneg %p128
        $region58: #{tpu_custom_call.1} parent=47 // pred_check_branch
          %419 = sbr.rel (%p417) target = $region60
        $region59: #{tpu_custom_call.1} parent=47 // pred_region
          %420 = dma.done [#allocation9], 256
        $region60: #{tpu_custom_call.1} parent=47 // pred_fallthru
          _
        // Predicated region
        $region61: #{tpu_custom_call.1} parent=47 // pred_check
          %p421 = pneg %p154
        $region62: #{tpu_custom_call.1} parent=47 // pred_check_branch
          %423 = sbr.rel (%p421) target = $region64
        $region63: #{tpu_custom_call.1} parent=47 // pred_region
          %424 = dma.done [#allocation12], 256
        $region64: #{tpu_custom_call.1} parent=47 // pred_fallthru
          _
        %s425 = sand.u32 %s63, 1
        %s426 = scalar_lea.sflag [#allocation6], %s425
        %s427 = sand.u32 %s63, 1
        %s428 = smul.addr %s427, 4
        %s429 = scalar_lea.vmem [#allocation5], %s428
        %p430 = pneg %p76
        %p431 = pneg %p73
        %p432 = pneg %p102
        %p433 = pneg %p99
        %p434 = pneg %p128
        %p435 = pneg %p125
        %p436 = pneg %p154
        %p437 = pneg %p151
        %p438 = pneg %p175
        %p439 = pneg %p172
        %p440 = pneg %p196
        %p441 = pneg %p193
        %p442 = pneg %p217
        %p443 = pneg %p214
        %p444 = pneg %p245
        %p445 = pneg %p242
        %s446 = sand.u32 %s232, 1
        %s447 = scalar_lea.sflag [#allocation7], %s446
        %s448 = sand.u32 %s232, 1
        %s449 = smul.addr %s448, 16
        %s450 = scalar_lea.vmem [#allocation13], %s449
        %p451 = pneg %p273
        %p452 = pneg %p270
        %s453 = sand.u32 %s32, 1
        %s454 = scalar_lea.sflag [#allocation15], %s453
        %s455 = sand.u32 %s260, 1
        %s456 = smul.addr %s455, 16
        %s457 = scalar_lea.vmem [#allocation14], %s456
        %p458 = pneg %p301
        %p459 = pneg %p298
        %s460 = sand.u32 %s32, 1
        %s461 = scalar_lea.sflag [#allocation15], %s460
        %s462 = sand.u32 %s288, 1
        %s463 = smul.addr %s462, 16
        %s464 = scalar_lea.vmem [#allocation16], %s463
        %s465 = smul.u32 4, %s39
        %s466 = smul.u32 4, %s39
        %s467 = smul.u32 4, %s39
        %p469 = scmp.eq.s32.totalorder %s39, 0
        // Predicated region
        $region65: #{tpu_custom_call.1} parent=47 // pred_check
          %p470 = pneg %p469
        $region66: #{tpu_custom_call.1} parent=47 // pred_check_branch
          %472 = sbr.rel (%p470) target = $region68
        $region67: #{tpu_custom_call.1} parent=47 // pred_region
          %vm473 = vcmask 261120
          %474 = vst.msk [vmem:[#allocation2] sm:$0xff] %vm473, 0.0
          %475 = vst.msk [vmem:[#allocation3] sm:$0xff] %vm473, 0.0
          %476 = vst.msk [vmem:[#allocation4] sm:$0xff] %vm473, 0.0
        $region68: #{tpu_custom_call.1} parent=47 // pred_fallthru
          _
        %v477 = vld [vmem:[%s408] sm:$0xf]
        %v478 = vld [vmem:[#allocation2] sm:$0xff]
        %v479 = vld [vmem:[#allocation8] sm:$0xf]
        %v480 = vld [vmem:[#allocation8 + $0x4] sm:$0xf]
        %v481 = vld [vmem:[#allocation8 + $0x8] sm:$0xf]
        %v482 = vld [vmem:[#allocation8 + $0xc] sm:$0xf]
        %v487 = vunpack.c.l.b16 %v479
        %v488 = vunpack.c.l.b16 %v480
        %v489 = vunpack.c.l.b16 %v481
        %v490 = vunpack.c.l.b16 %v482
        %v491 = vpack.c.b16 %v488, %v487
        %v492 = vpack.c.b16 %v490, %v489
        %vm495 = vcmask 261120
        %v497 = vsel %vm495, %v477, 0
        %499 = vmatprep.subr.bf16.mxu0 0
        %500 = vmatpush1.bf16.msra.mxu0 %v491
        %501 = vmatprep.subr.bf16.mxu0 0
        %502 = vmatpush1.bf16.msra.mxu0 %v492
        %503 = vmatprep.subr.bf16.mxu0 0
        %504 = vmatpush1.bf16.msra.mxu0 0
        %505 = vmatprep.subr.bf16.mxu0 0
        %506 = vmatpush1.bf16.msra.mxu0 0
        %507 = vmatprep.subr.bf16.mxu0 0
        %508 = vmatpush1.bf16.msra.mxu0 0
        %509 = vmatprep.subr.bf16.mxu0 0
        %510 = vmatpush1.bf16.msra.mxu0 0
        %511 = vmatprep.subr.bf16.mxu0 0
        %512 = vmatpush1.bf16.msra.mxu0 0
        %513 = vmatprep.subr.bf16.mxu0 0
        %514 = vmatpush1.bf16.msra.mxu0 0
        %515 = vmatprep.subr.bf16.mxu0 0
        %516 = vmatpush1.bf16.msra.mxu0 0
        %517 = vmatprep.subr.bf16.mxu0 0
        %518 = vmatpush1.bf16.msra.mxu0 0
        %519 = vmatprep.subr.bf16.mxu0 0
        %520 = vmatpush1.bf16.msra.mxu0 0
        %521 = vmatprep.subr.bf16.mxu0 0
        %522 = vmatpush1.bf16.msra.mxu0 0
        %523 = vmatprep.subr.bf16.mxu0 0
        %524 = vmatpush1.bf16.msra.mxu0 0
        %525 = vmatprep.subr.bf16.mxu0 0
        %526 = vmatpush1.bf16.msra.mxu0 0
        %527 = vmatprep.subr.bf16.mxu0 0
        %528 = vmatpush1.bf16.msra.mxu0 0
        %529 = vmatprep.subr.bf16.mxu0 0
        %530 = vmatpush1.bf16.msra.mxu0 0
        %531 = vmatprep.mubr.bf16.mxu0 0
        %532 = vmatmul.mubr.bf16.gmra.mrb[0].mxu0 %v497
        %v533 = vpop.f32.mrb[0].mxu0
        %v534 = vadd.f32 0.0, %v533
        %v535 = vpop.f32.mrb[0].mxu0
        %v536 = vpop.f32.mrb[0].mxu0
        %v537 = vpop.f32.mrb[0].mxu0
        %538 = vdwg.mxu0
        %v539 = vadd.f32 %v478, %v534
        %540 = vst.msk [vmem:[#allocation2] sm:$0xff] %vm495, %v539
        %v541 = vld [vmem:[#allocation3] sm:$0xff]
        %v542 = vld [vmem:[#allocation10] sm:$0xf]
        %v543 = vld [vmem:[#allocation10 + $0x4] sm:$0xf]
        %v544 = vld [vmem:[#allocation10 + $0x8] sm:$0xf]
        %v545 = vld [vmem:[#allocation10 + $0xc] sm:$0xf]
        %v550 = vunpack.c.l.b16 %v542
        %v551 = vunpack.c.l.b16 %v543
        %v552 = vunpack.c.l.b16 %v544
        %v553 = vunpack.c.l.b16 %v545
        %v554 = vpack.c.b16 %v551, %v550
        %v555 = vpack.c.b16 %v553, %v552
        %558 = vmatprep.subr.bf16.mxu0 0
        %559 = vmatpush1.bf16.msra.mxu0 %v554
        %560 = vmatprep.subr.bf16.mxu0 0
        %561 = vmatpush1.bf16.msra.mxu0 %v555
        %562 = vmatprep.subr.bf16.mxu0 0
        %563 = vmatpush1.bf16.msra.mxu0 0
        %564 = vmatprep.subr.bf16.mxu0 0
        %565 = vmatpush1.bf16.msra.mxu0 0
        %566 = vmatprep.subr.bf16.mxu0 0
        %567 = vmatpush1.bf16.msra.mxu0 0
        %568 = vmatprep.subr.bf16.mxu0 0
        %569 = vmatpush1.bf16.msra.mxu0 0
        %570 = vmatprep.subr.bf16.mxu0 0
        %571 = vmatpush1.bf16.msra.mxu0 0
        %572 = vmatprep.subr.bf16.mxu0 0
        %573 = vmatpush1.bf16.msra.mxu0 0
        %574 = vmatprep.subr.bf16.mxu0 0
        %575 = vmatpush1.bf16.msra.mxu0 0
        %576 = vmatprep.subr.bf16.mxu0 0
        %577 = vmatpush1.bf16.msra.mxu0 0
        %578 = vmatprep.subr.bf16.mxu0 0
        %579 = vmatpush1.bf16.msra.mxu0 0
        %580 = vmatprep.subr.bf16.mxu0 0
        %581 = vmatpush1.bf16.msra.mxu0 0
        %582 = vmatprep.subr.bf16.mxu0 0
        %583 = vmatpush1.bf16.msra.mxu0 0
        %584 = vmatprep.subr.bf16.mxu0 0
        %585 = vmatpush1.bf16.msra.mxu0 0
        %586 = vmatprep.subr.bf16.mxu0 0
        %587 = vmatpush1.bf16.msra.mxu0 0
        %588 = vmatprep.subr.bf16.mxu0 0
        %589 = vmatpush1.bf16.msra.mxu0 0
        %590 = vmatprep.mubr.bf16.mxu0 0
        %591 = vmatmul.mubr.bf16.gmra.mrb[0].mxu0 %v497
        %v592 = vpop.f32.mrb[0].mxu0
        %v593 = vadd.f32 0.0, %v592
        %v594 = vpop.f32.mrb[0].mxu0
        %v595 = vpop.f32.mrb[0].mxu0
        %v596 = vpop.f32.mrb[0].mxu0
        %597 = vdwg.mxu0
        %v598 = vadd.f32 %v541, %v593
        %599 = vst.msk [vmem:[#allocation3] sm:$0xff] %vm495, %v598
        %v600 = vld [vmem:[#allocation4] sm:$0xff]
        %v601 = vld [vmem:[#allocation11] sm:$0xf]
        %v602 = vld [vmem:[#allocation11 + $0x4] sm:$0xf]
        %v603 = vld [vmem:[#allocation11 + $0x8] sm:$0xf]
        %v604 = vld [vmem:[#allocation11 + $0xc] sm:$0xf]
        %v609 = vunpack.c.l.b16 %v601
        %v610 = vunpack.c.l.b16 %v602
        %v611 = vunpack.c.l.b16 %v603
        %v612 = vunpack.c.l.b16 %v604
        %v613 = vpack.c.b16 %v610, %v609
        %v614 = vpack.c.b16 %v612, %v611
        %617 = vmatprep.subr.bf16.mxu0 0
        %618 = vmatpush1.bf16.msra.mxu0 %v613
        %619 = vmatprep.subr.bf16.mxu0 0
        %620 = vmatpush1.bf16.msra.mxu0 %v614
        %621 = vmatprep.subr.bf16.mxu0 0
        %622 = vmatpush1.bf16.msra.mxu0 0
        %623 = vmatprep.subr.bf16.mxu0 0
        %624 = vmatpush1.bf16.msra.mxu0 0
        %625 = vmatprep.subr.bf16.mxu0 0
        %626 = vmatpush1.bf16.msra.mxu0 0
        %627 = vmatprep.subr.bf16.mxu0 0
        %628 = vmatpush1.bf16.msra.mxu0 0
        %629 = vmatprep.subr.bf16.mxu0 0
        %630 = vmatpush1.bf16.msra.mxu0 0
        %631 = vmatprep.subr.bf16.mxu0 0
        %632 = vmatpush1.bf16.msra.mxu0 0
        %633 = vmatprep.subr.bf16.mxu0 0
        %634 = vmatpush1.bf16.msra.mxu0 0
        %635 = vmatprep.subr.bf16.mxu0 0
        %636 = vmatpush1.bf16.msra.mxu0 0
        %637 = vmatprep.subr.bf16.mxu0 0
        %638 = vmatpush1.bf16.msra.mxu0 0
        %639 = vmatprep.subr.bf16.mxu0 0
        %640 = vmatpush1.bf16.msra.mxu0 0
        %641 = vmatprep.subr.bf16.mxu0 0
        %642 = vmatpush1.bf16.msra.mxu0 0
        %643 = vmatprep.subr.bf16.mxu0 0
        %644 = vmatpush1.bf16.msra.mxu0 0
        %645 = vmatprep.subr.bf16.mxu0 0
        %646 = vmatpush1.bf16.msra.mxu0 0
        %647 = vmatprep.subr.bf16.mxu0 0
        %648 = vmatpush1.bf16.msra.mxu0 0
        %649 = vmatprep.mubr.bf16.mxu0 0
        %650 = vmatmul.mubr.bf16.gmra.mrb[0].mxu0 %v497
        %v651 = vpop.f32.mrb[0].mxu0
        %v652 = vadd.f32 0.0, %v651
        %v653 = vpop.f32.mrb[0].mxu0
        %v654 = vpop.f32.mrb[0].mxu0
        %v655 = vpop.f32.mrb[0].mxu0
        %656 = vdwg.mxu0
        %v657 = vadd.f32 %v600, %v652
        %658 = vst.msk [vmem:[#allocation4] sm:$0xff] %vm495, %v657
        // Predicated region
        $region69: #{tpu_custom_call.1} parent=47 // pred_check
          %p659 = pneg %p469
        $region70: #{tpu_custom_call.1} parent=47 // pred_check_branch
          %661 = sbr.rel (%p659) target = $region72
        $region71: #{tpu_custom_call.1} parent=47 // pred_region
          %v662 = vld [vmem:[#allocation2] sm:$0xff]
          %v663 = vld [vmem:[%s4] sm:$0x1]
          %v665 = vlaneseq
          %v666 = vshrl.u32 %v665, 7
          %v667 = vsub.s32 0, %v666
          %v668 = vrot.slane %v663, %v667
          %v670 = vadd.f32 %v662, %v668
          %v671 = vld [vmem:[#allocation3] sm:$0xff]
          %v672 = vld [vmem:[%s5] sm:$0x1]
          %v674 = vlaneseq
          %v675 = vshrl.u32 %v674, 7
          %v676 = vsub.s32 0, %v675
          %v677 = vrot.slane %v672, %v676
          %v679 = vadd.f32 %v671, %v677
          %v680 = vld [vmem:[#allocation4] sm:$0xff]
          %v681 = vld [vmem:[%s6] sm:$0x1]
          %v683 = vlaneseq
          %v684 = vshrl.u32 %v683, 7
          %v685 = vsub.s32 0, %v684
          %v686 = vrot.slane %v681, %v685
          %v688 = vadd.f32 %v680, %v686
          %v689 = vpack.c.bf16 %v670, %v670
          %vm690 = vcmask 60416
          %691 = vst.msk [vmem:[%s450] sm:$0xf] %vm690, %v689
          %v692 = vpack.c.bf16 %v679, %v679
          %693 = vst.msk [vmem:[%s457] sm:$0xf] %vm690, %v692
          %v694 = vpack.c.bf16 %v688, %v688
          %695 = vst.msk [vmem:[%s464] sm:$0xf] %vm690, %v694
          %v697 = vunpack.c.l.b16 %v689
          %v698 = vpack.c.b16 %v697, %v697
          %699 = vrot.lane.b32.xlu0 %v698, 120
          %v700 = vpop.permute.xlu0 %699
          %s702 = scalar_lea.vmem %s450, 4 [#allocation13]
          %703 = vst.msk [vmem:[%s702] sm:$0xf] %vm690, %v700
          %v705 = vunpack.c.l.b16 %v692
          %v706 = vpack.c.b16 %v705, %v705
          %707 = vrot.lane.b32.xlu0 %v706, 120
          %v708 = vpop.permute.xlu0 %707
          %s710 = scalar_lea.vmem %s457, 4 [#allocation14]
          %711 = vst.msk [vmem:[%s710] sm:$0xf] %vm690, %v708
          %v713 = vunpack.c.l.b16 %v694
          %v714 = vpack.c.b16 %v713, %v713
          %715 = vrot.lane.b32.xlu0 %v714, 120
          %v716 = vpop.permute.xlu0 %715
          %s718 = scalar_lea.vmem %s464, 4 [#allocation16]
          %719 = vst.msk [vmem:[%s718] sm:$0xf] %vm690, %v716
          %720 = vrot.lane.b32.xlu0 %v698, 112
          %v721 = vpop.permute.xlu0 %720
          %s723 = scalar_lea.vmem %s450, 8 [#allocation13]
          %724 = vst.msk [vmem:[%s723] sm:$0xf] %vm690, %v721
          %725 = vrot.lane.b32.xlu0 %v706, 112
          %v726 = vpop.permute.xlu0 %725
          %s728 = scalar_lea.vmem %s457, 8 [#allocation14]
          %729 = vst.msk [vmem:[%s728] sm:$0xf] %vm690, %v726
          %730 = vrot.lane.b32.xlu0 %v714, 112
          %v731 = vpop.permute.xlu0 %730
          %s733 = scalar_lea.vmem %s464, 8 [#allocation16]
          %734 = vst.msk [vmem:[%s733] sm:$0xf] %vm690, %v731
          %735 = vrot.lane.b32.xlu0 %v698, 104
          %v736 = vpop.permute.xlu0 %735
          %s738 = scalar_lea.vmem %s450, 12 [#allocation13]
          %739 = vst.msk [vmem:[%s738] sm:$0xf] %vm690, %v736
          %740 = vrot.lane.b32.xlu0 %v706, 104
          %v741 = vpop.permute.xlu0 %740
          %s743 = scalar_lea.vmem %s457, 12 [#allocation14]
          %744 = vst.msk [vmem:[%s743] sm:$0xf] %vm690, %v741
          %745 = vrot.lane.b32.xlu0 %v714, 104
          %v746 = vpop.permute.xlu0 %745
          %s748 = scalar_lea.vmem %s464, 12 [#allocation16]
          %749 = vst.msk [vmem:[%s748] sm:$0xf] %vm690, %v746
        $region72: #{tpu_custom_call.1} parent=47 // pred_fallthru
          _
        %s750 = sand.u32 %s232, 1
        %s751 = scalar_lea.sflag [#allocation7], %s750
        %s752 = sand.u32 %s232, 1
        %s753 = smul.addr %s752, 16
        %s754 = scalar_lea.vmem [#allocation13], %s753
        %s755 = sand.u32 %s32, 1
        %s756 = scalar_lea.sflag [#allocation15], %s755
        %s757 = sand.u32 %s260, 1
        %s758 = smul.addr %s757, 16
        %s759 = scalar_lea.vmem [#allocation14], %s758
        %s760 = sand.u32 %s32, 1
        %s761 = scalar_lea.sflag [#allocation15], %s760
        %s762 = sand.u32 %s288, 1
        %s763 = smul.addr %s762, 16
        %s764 = scalar_lea.vmem [#allocation16], %s763
        // Predicated region
        $region73: #{tpu_custom_call.1} parent=47 // pred_check
          %p765 = pneg %p242
        $region74: #{tpu_custom_call.1} parent=47 // pred_check_branch
          %767 = sbr.rel (%p765) target = $region76
        $region75: #{tpu_custom_call.1} parent=47 // pred_region
          %s769 = ssub.s32 256, 256
          %770 = vsyncadd %s751, %s769
          %s771 = smul.addr %s37, 4
          %s772 = sadd.s32 %s38, %s771
          %s773 = smul.addr %s772, 64
          %s774 = scalar_lea.hbm %s7, %s773
          %s775 = sshll.u32 %s754, 4
          %s776 = int_to_ptr.vmem [resolvable:$true] %s775
          %781 = dma.vmem_to_hbm [thread:$0]  %s776, 256, %s774, %s751, 64, 64, 4
        $region76: #{tpu_custom_call.1} parent=47 // pred_fallthru
          _
        // Predicated region
        $region77: #{tpu_custom_call.1} parent=47 // pred_check
          %p782 = pneg %p270
        $region78: #{tpu_custom_call.1} parent=47 // pred_check_branch
          %784 = sbr.rel (%p782) target = $region80
        $region79: #{tpu_custom_call.1} parent=47 // pred_region
          %s786 = ssub.s32 256, 256
          %787 = vsyncadd %s756, %s786
          %s788 = smul.addr %s37, 4
          %s789 = sadd.s32 %s38, %s788
          %s790 = smul.addr %s789, 64
          %s791 = scalar_lea.hbm %s8, %s790
          %s792 = sshll.u32 %s759, 4
          %s793 = int_to_ptr.vmem [resolvable:$true] %s792
          %798 = dma.vmem_to_hbm [thread:$0]  %s793, 256, %s791, %s756, 64, 64, 4
        $region80: #{tpu_custom_call.1} parent=47 // pred_fallthru
          _
        // Predicated region
        $region81: #{tpu_custom_call.1} parent=47 // pred_check
          %p799 = pneg %p298
        $region82: #{tpu_custom_call.1} parent=47 // pred_check_branch
          %801 = sbr.rel (%p799) target = $region84
        $region83: #{tpu_custom_call.1} parent=47 // pred_region
          %s803 = ssub.s32 256, 256
          %804 = vsyncadd %s761, %s803
          %s805 = smul.addr %s37, 4
          %s806 = sadd.s32 %s38, %s805
          %s807 = smul.addr %s806, 64
          %s808 = scalar_lea.hbm %s9, %s807
          %s809 = sshll.u32 %s764, 4
          %s810 = int_to_ptr.vmem [resolvable:$true] %s809
          %815 = dma.vmem_to_hbm [thread:$0]  %s810, 256, %s808, %s761, 64, 64, 4
        $region84: #{tpu_custom_call.1} parent=47 // pred_fallthru
          _
      $region48: #{tpu_custom_call.1} parent=5 // pred_fallthru
        _
      %p816 = scmp.le.s32.totalorder 2, %s27
      // Predicated region
      $region85: #{tpu_custom_call.1} parent=5 // pred_check
        %p817 = pneg %p816
      $region86: #{tpu_custom_call.1} parent=5 // pred_check_branch
        %819 = sbr.rel (%p817) target = $region88
      $region87: #{tpu_custom_call.1} parent=5 // pred_region
        %s820 = ssub.s32 %s27, 2
        // Predicated region
        $region89: #{tpu_custom_call.1} parent=87 // pred_check
          %p821 = pneg %p248
        $region90: #{tpu_custom_call.1} parent=87 // pred_check_branch
          %823 = sbr.rel (%p821) target = $region92
        $region91: #{tpu_custom_call.1} parent=87 // pred_region
          %s824 = sand.u32 %s233, 1
          %s825 = scalar_lea.sflag [#allocation7], %s824
          %s826 = sand.u32 %s233, 1
          %s827 = smul.addr %s826, 16
          %s828 = scalar_lea.vmem [#allocation13], %s827
          %829 = dma.done %s825, 256
        $region92: #{tpu_custom_call.1} parent=87 // pred_fallthru
          _
        // Predicated region
        $region93: #{tpu_custom_call.1} parent=87 // pred_check
          %p830 = pneg %p276
        $region94: #{tpu_custom_call.1} parent=87 // pred_check_branch
          %832 = sbr.rel (%p830) target = $region96
        $region95: #{tpu_custom_call.1} parent=87 // pred_region
          %s833 = sand.u32 %s33, 1
          %s834 = scalar_lea.sflag [#allocation15], %s833
          %s835 = sand.u32 %s261, 1
          %s836 = smul.addr %s835, 16
          %s837 = scalar_lea.vmem [#allocation14], %s836
          %838 = dma.done %s834, 256
        $region96: #{tpu_custom_call.1} parent=87 // pred_fallthru
          _
        // Predicated region
        $region97: #{tpu_custom_call.1} parent=87 // pred_check
          %p839 = pneg %p304
        $region98: #{tpu_custom_call.1} parent=87 // pred_check_branch
          %841 = sbr.rel (%p839) target = $region100
        $region99: #{tpu_custom_call.1} parent=87 // pred_region
          %s842 = sand.u32 %s33, 1
          %s843 = scalar_lea.sflag [#allocation15], %s842
          %s844 = sand.u32 %s289, 1
          %s845 = smul.addr %s844, 16
          %s846 = scalar_lea.vmem [#allocation16], %s845
          %847 = dma.done %s843, 256
        $region100: #{tpu_custom_call.1} parent=87 // pred_fallthru
          _
      $region88: #{tpu_custom_call.1} parent=5 // pred_fallthru
        _
    $region6: #{tpu_custom_call.1} parent=1 // loop_footer
      %s31 = sadd.s32 1, %s27
    $region7: #{tpu_custom_call.1} parent=1 // loop_footer_branch
      %26 = sbr.rel target = $region3
    $region8: #{tpu_custom_call.1} parent=1 // loop_exit
      _
    %848 = vsyncpa [#allocation6], 1
    %s849 = scalar_lea.sflag [#allocation6], 1
    %850 = vsyncpa %s849, 1
    %851 = vsyncpa [#allocation9], 1
    %852 = vsyncpa [#allocation12], 1
    %853 = vsyncpa [#allocation7], 1
    %s854 = scalar_lea.sflag [#allocation7], 1
    %855 = vsyncpa %s854, 1
    %856 = vsyncpa [#allocation15], 1
    %s857 = scalar_lea.sflag [#allocation15], 1
    %858 = vsyncpa %s857, 1

</llo_original>
